<compile_context>
chip_gen: v6e
topology: v6e:2x2x1
jax: 0.10.0
libtpu: 0.0.40
codegen_flags: <defaults>
</compile_context>

<pallas_src>
import jax
import jax.numpy as jnp
from jax.experimental import pallas as pl
from jax.experimental.pallas import tpu as pltpu

SPLIT_SIZE = 2


def _split_kernel(x_ref, *out_refs):
    # x_ref: (N, F_BLOCK) lane-dense column block of the (flattened) input.
    # out_refs[i]: (size_i, F_BLOCK) column block of split chunk i.
    x = x_ref[...]
    row = 0
    for o_ref in out_refs:
        sz = o_ref.shape[0]
        o_ref[...] = x[row:row + sz, :]
        row += sz


def _choose_col_block(F, n_rows, itemsize):
    """Pick a lane-dense column-block width that divides F evenly."""
    if F % 128 != 0:
        # Fall back to the full extent (allowed by the (8,128) rule when the
        # block equals the full array dim).
        return F
    target_bytes = 2 * 1024 * 1024  # ~2 MiB per input block
    target_cols = max(128, target_bytes // max(1, n_rows * itemsize))
    cols = min(F, (target_cols // 128) * 128)
    cols = max(cols, 128)
    while F % cols != 0:
        cols -= 128
    return cols


def split_pallas(x, split_size=SPLIT_SIZE):
    """Equivalent of torch.split(x, split_size) along dim 0 (ragged tail OK)."""
    N = x.shape[0]
    trailing = x.shape[1:]
    F = 1
    for d in trailing:
        F *= d

    # Chunk sizes exactly as torch.split: full chunks of `split_size`, plus a
    # smaller final chunk if N is not divisible.
    sizes = []
    n = N
    while n > 0:
        s = min(split_size, n)
        sizes.append(s)
        n -= s

    x2 = x.reshape(N, F)  # lane-dense 2-D view; free (contiguous) reshape

    fb = _choose_col_block(F, N, jnp.dtype(x.dtype).itemsize)
    grid = (F // fb,)

    out_shapes = tuple(jax.ShapeDtypeStruct((s, F), x.dtype) for s in sizes)
    in_specs = [pl.BlockSpec((N, fb), lambda j: (0, j))]
    out_specs = tuple(pl.BlockSpec((s, fb), lambda j: (0, j)) for s in sizes)

    outs = pl.pallas_call(
        _split_kernel,
        out_shape=out_shapes,
        grid=grid,
        in_specs=in_specs,
        out_specs=out_specs,
        compiler_params=pltpu.CompilerParams(
            dimension_semantics=("parallel",),
            vmem_limit_bytes=32 << 20,
        ),
    )(x2)

    if not isinstance(outs, (tuple, list)):
        outs = (outs,)

    # Restore original trailing dims (free metadata reshape).
    return tuple(o.reshape((s,) + trailing) for o, s in zip(outs, sizes))


if __name__ == "__main__":
    key = jax.random.PRNGKey(0)
    # Split dim 0 (size 6) into chunks of 2 -> three (2, 8, 128) outputs.
    x = jax.random.normal(key, (6, 8, 128), dtype=jnp.float32)

    outs = split_pallas(x)
    outs = jax.block_until_ready(outs)

    refs = jnp.split(x, x.shape[0] // SPLIT_SIZE, axis=0)
    assert len(outs) == len(refs)
    for o, r in zip(outs, refs):
        assert o.shape == r.shape == (SPLIT_SIZE, 8, 128)
        assert jnp.array_equal(o, r)

    # Ragged case matching torch.split semantics: 5 rows -> chunks of 2, 2, 1.
    x_ragged = jax.random.normal(jax.random.PRNGKey(1), (5, 8, 128), dtype=jnp.float32)
    outs_r = jax.block_until_ready(split_pallas(x_ragged))
    assert [o.shape[0] for o in outs_r] == [2, 2, 1]
    assert jnp.array_equal(outs_r[0], x_ragged[0:2])
    assert jnp.array_equal(outs_r[1], x_ragged[2:4])
    assert jnp.array_equal(outs_r[2], x_ragged[4:5])

    print("KERNEL_OK")
</pallas_src>

<mosaic_0001>
module attributes {stable_mosaic.version = 11 : i64} {
  func.func @_split_kernel(%arg0: i32, %arg1: memref<6x1024xf32, #tpu.memory_space<vmem>>, %arg2: memref<2x1024xf32, #tpu.memory_space<vmem>>, %arg3: memref<2x1024xf32, #tpu.memory_space<vmem>>, %arg4: memref<2x1024xf32, #tpu.memory_space<vmem>>) attributes {dimension_semantics = [#tpu.dimension_semantics<parallel>], iteration_bounds = array<i64: 1>, scalar_prefetch = 0 : i64, scratch_operands = 0 : i64, tpu.core_type = #tpu.core_type<tc>, window_params = [{transform_indices = @transform_0, window_bounds = array<i64: 6, 1024>}, {transform_indices = @transform_1, window_bounds = array<i64: 2, 1024>}, {transform_indices = @transform_2, window_bounds = array<i64: 2, 1024>}, {transform_indices = @transform_3, window_bounds = array<i64: 2, 1024>}]} {
    %c0 = arith.constant 0 : index
    %c0_0 = arith.constant 0 : index
    %0 = vector.load %arg1[%c0, %c0_0] : memref<6x1024xf32, #tpu.memory_space<vmem>>, vector<6x1024xf32>
    %1 = vector.extract_strided_slice %0 {offsets = [0, 0], sizes = [2, 1024], strides = [1, 1]} : vector<6x1024xf32> to vector<2x1024xf32>
    %c0_1 = arith.constant 0 : index
    %c0_2 = arith.constant 0 : index
    %2 = vector.load %arg2[%c0_1, %c0_2] : memref<2x1024xf32, #tpu.memory_space<vmem>>, vector<2x1024xf32>
    tpu.vector_store %arg2[%c0_1, %c0_2], %1 {strides = array<i32>} : memref<2x1024xf32, #tpu.memory_space<vmem>>, vector<2x1024xf32>,
    %3 = vector.extract_strided_slice %0 {offsets = [2, 0], sizes = [2, 1024], strides = [1, 1]} : vector<6x1024xf32> to vector<2x1024xf32>
    %c0_3 = arith.constant 0 : index
    %c0_4 = arith.constant 0 : index
    %4 = vector.load %arg3[%c0_3, %c0_4] : memref<2x1024xf32, #tpu.memory_space<vmem>>, vector<2x1024xf32>
    tpu.vector_store %arg3[%c0_3, %c0_4], %3 {strides = array<i32>} : memref<2x1024xf32, #tpu.memory_space<vmem>>, vector<2x1024xf32>,
    %5 = vector.extract_strided_slice %0 {offsets = [4, 0], sizes = [2, 1024], strides = [1, 1]} : vector<6x1024xf32> to vector<2x1024xf32>
    %c0_5 = arith.constant 0 : index
    %c0_6 = arith.constant 0 : index
    %6 = vector.load %arg4[%c0_5, %c0_6] : memref<2x1024xf32, #tpu.memory_space<vmem>>, vector<2x1024xf32>
    tpu.vector_store %arg4[%c0_5, %c0_6], %5 {strides = array<i32>} : memref<2x1024xf32, #tpu.memory_space<vmem>>, vector<2x1024xf32>,
    return
  }
  func.func @transform_0(%arg0: i32) -> (i32, i32) {
    %c0_i32 = arith.constant 0 : i32
    %c0_i32_0 = arith.constant 0 : i32
    return %c0_i32, %arg0 : i32, i32
  }
  func.func @transform_1(%arg0: i32) -> (i32, i32) {
    %c0_i32 = arith.constant 0 : i32
    %c0_i32_0 = arith.constant 0 : i32
    return %c0_i32, %arg0 : i32, i32
  }
  func.func @transform_2(%arg0: i32) -> (i32, i32) {
    %c0_i32 = arith.constant 0 : i32
    %c0_i32_0 = arith.constant 0 : i32
    return %c0_i32, %arg0 : i32, i32
  }
  func.func @transform_3(%arg0: i32) -> (i32, i32) {
    %c0_i32 = arith.constant 0 : i32
    %c0_i32_0 = arith.constant 0 : i32
    return %c0_i32, %arg0 : i32, i32
  }
}

</mosaic_0001>

<llo_original>
// kernel: tpu_custom_call.1
$region0: #{tpu_custom_call.1}
  #allocation0 [shape = 'u32[]', space=smem, size = 0x4, offset = 0x4, fixed_abs, tag = 'smem constant byte address 0x4 - core index']
  #allocation1 [shape = 'u32[144,128]{1,0:T(1,128)}', space=vmem, size = 0x12000, scoped, tag = 'internal scratch']
  %s0 = inlined_call_operand.hbm [shape: f32[6,1024], index: 0, kind: input, shape index: {}]
  %s1 = inlined_call_operand.hbm [shape: f32[2,1024], index: 1, kind: output, shape index: {0}]
  %s2 = inlined_call_operand.hbm [shape: f32[2,1024], index: 2, kind: output, shape index: {1}]
  %s3 = inlined_call_operand.hbm [shape: f32[2,1024], index: 3, kind: output, shape index: {2}]
  %4 = xla_tuple %s1, %s2, %s3
  %s5 = sld [smem:[#allocation0]]
  $region34: #{tpu_custom_call.1} parent=0
    _
  %s7 = ssub.s32 1, %s5
  %s8 = scalar_select 0, %s7, %s5
  $region1: #{tpu_custom_call.1} parent=0
    #allocation2 [shape = 'u8[32768]{0}', space=vmem, size = 0x8000, scoped, tag = 'input window, operand 0, single buffered']
    #allocation3 [shape = 's32[1]{0}', space=sflag, size = 0x4, scoped, tag = 'scoped memory for tpu_custom_call.1']
    #allocation4 [shape = 's32[1]{0}', space=sflag, size = 0x4, scoped, tag = 'scoped memory for tpu_custom_call.1']
    #allocation5 [shape = 'u8[8192]{0}', space=vmem, size = 0x2000, scoped, tag = 'output window, operand 0, single buffered']
    #allocation6 [shape = 'u8[8192]{0}', space=vmem, size = 0x2000, scoped, tag = 'output window, operand 1, single buffered']
    #allocation7 [shape = 's32[1]{0}', space=sflag, size = 0x4, scoped, tag = 'scoped memory for tpu_custom_call.1']
    #allocation8 [shape = 'u8[8192]{0}', space=vmem, size = 0x2000, scoped, tag = 'output window, operand 2, single buffered']
    %9 = vsyncpa [#allocation3], 0
    %10 = vsyncpa [#allocation4], 0
    %11 = vsyncpa [#allocation7], 0
    // Predicated region
    $region2: #{tpu_custom_call.1} parent=1 // pred_check
      _
    $region3: #{tpu_custom_call.1} parent=1 // pred_check_branch
      %13 = sbr.rel (0) target = $region5
    $region4: #{tpu_custom_call.1} parent=1 // pred_region
      %s15 = ssub.s32 1024, 1024
      %16 = vsyncadd [#allocation3], %s15
      %s18 = sshll.u32 [#allocation2], 4
      %s19 = int_to_ptr.vmem [resolvable:$true] %s18
      %21 = dma.hbm_to_vmem [thread:$0]  %s0, 1024, %s19, [#allocation3]
    $region5: #{tpu_custom_call.1} parent=1 // pred_fallthru
      _
    // Predicated region
    $region6: #{tpu_custom_call.1} parent=1 // pred_check
      _
    $region7: #{tpu_custom_call.1} parent=1 // pred_check_branch
      %23 = sbr.rel (0) target = $region9
    $region8: #{tpu_custom_call.1} parent=1 // pred_region
      %24 = dma.done [#allocation3], 1024
    $region9: #{tpu_custom_call.1} parent=1 // pred_fallthru
      _
    %v25 = vld [vmem:[#allocation2] sm:$0x3f]
    %v26 = vld [vmem:[#allocation2 + $0x8] sm:$0x3f]
    %v27 = vld [vmem:[#allocation2 + $0x10] sm:$0x3f]
    %v28 = vld [vmem:[#allocation2 + $0x18] sm:$0x3f]
    %v29 = vld [vmem:[#allocation2 + $0x20] sm:$0x3f]
    %v30 = vld [vmem:[#allocation2 + $0x28] sm:$0x3f]
    %v31 = vld [vmem:[#allocation2 + $0x30] sm:$0x3f]
    %v32 = vld [vmem:[#allocation2 + $0x38] sm:$0x3f]
    %v41 = vcombine.low %v25, %v26
    %v42 = vcombine.low %v27, %v28
    %v44 = vunpack.c.l.s4 1983009808
    %v45 = vunpack.c.0.s8 %v44
    %v46 = vlaneseq
    %v47 = vshrl.u32 %v46, 7
    %v48 = vsub.s32 %v45, %v47
    %v49 = vrot.slane %v41, %v48
    %v51 = vunpack.c.l.s4 1983009808
    %v52 = vunpack.c.0.s8 %v51
    %v53 = vlaneseq
    %v54 = vshrl.u32 %v53, 7
    %v55 = vsub.s32 %v52, %v54
    %v56 = vrot.slane %v42, %v55
    %v57 = vcombine.low %v49, %v56
    %v58 = vcombine.low %v29, %v30
    %v59 = vcombine.low %v31, %v32
    %v61 = vunpack.c.l.s4 1983009808
    %v62 = vunpack.c.0.s8 %v61
    %v63 = vlaneseq
    %v64 = vshrl.u32 %v63, 7
    %v65 = vsub.s32 %v62, %v64
    %v66 = vrot.slane %v58, %v65
    %v68 = vunpack.c.l.s4 1983009808
    %v69 = vunpack.c.0.s8 %v68
    %v70 = vlaneseq
    %v71 = vshrl.u32 %v70, 7
    %v72 = vsub.s32 %v69, %v71
    %v73 = vrot.slane %v59, %v72
    %v74 = vcombine.low %v66, %v73
    %77 = vst [vmem:[#allocation5] sm:$0xff] %v57
    %78 = vst [vmem:[#allocation5 + $0x8] sm:$0xff] %v74
    %v79 = vcombine.high %v49, %v56
    %v80 = vcombine.high %v66, %v73
    %83 = vst [vmem:[#allocation6] sm:$0xff] %v79
    %84 = vst [vmem:[#allocation6 + $0x8] sm:$0xff] %v80
    %v85 = vcombine.high %v25, %v26
    %v86 = vcombine.high %v27, %v28
    %v88 = vunpack.c.l.s4 1983009808
    %v89 = vunpack.c.0.s8 %v88
    %v90 = vlaneseq
    %v91 = vshrl.u32 %v90, 7
    %v92 = vsub.s32 %v89, %v91
    %v93 = vrot.slane %v85, %v92
    %v95 = vunpack.c.l.s4 1983009808
    %v96 = vunpack.c.0.s8 %v95
    %v97 = vlaneseq
    %v98 = vshrl.u32 %v97, 7
    %v99 = vsub.s32 %v96, %v98
    %v100 = vrot.slane %v86, %v99
    %v101 = vcombine.low %v93, %v100
    %v102 = vcombine.high %v29, %v30
    %v103 = vcombine.high %v31, %v32
    %v105 = vunpack.c.l.s4 1983009808
    %v106 = vunpack.c.0.s8 %v105
    %v107 = vlaneseq
    %v108 = vshrl.u32 %v107, 7
    %v109 = vsub.s32 %v106, %v108
    %v110 = vrot.slane %v102, %v109
    %v112 = vunpack.c.l.s4 1983009808
    %v113 = vunpack.c.0.s8 %v112
    %v114 = vlaneseq
    %v115 = vshrl.u32 %v114, 7
    %v116 = vsub.s32 %v113, %v115
    %v117 = vrot.slane %v103, %v116
    %v118 = vcombine.low %v110, %v117
    %121 = vst [vmem:[#allocation8] sm:$0xff] %v101
    %122 = vst [vmem:[#allocation8 + $0x8] sm:$0xff] %v118
    // Predicated region
    $region10: #{tpu_custom_call.1} parent=1 // pred_check
      _
    $region11: #{tpu_custom_call.1} parent=1 // pred_check_branch
      %124 = sbr.rel (0) target = $region13
    $region12: #{tpu_custom_call.1} parent=1 // pred_region
      %s126 = ssub.s32 256, 256
      %127 = vsyncadd [#allocation4], %s126
      %s129 = sshll.u32 [#allocation5], 4
      %s130 = int_to_ptr.vmem [resolvable:$true] %s129
      %132 = dma.vmem_to_hbm [thread:$0]  %s130, 256, %s1, [#allocation4]
    $region13: #{tpu_custom_call.1} parent=1 // pred_fallthru
      _
    // Predicated region
    $region14: #{tpu_custom_call.1} parent=1 // pred_check
      _
    $region15: #{tpu_custom_call.1} parent=1 // pred_check_branch
      %134 = sbr.rel (0) target = $region17
    $region16: #{tpu_custom_call.1} parent=1 // pred_region
      %s136 = ssub.s32 256, 256
      %137 = vsyncadd [#allocation7], %s136
      %s139 = sshll.u32 [#allocation6], 4
      %s140 = int_to_ptr.vmem [resolvable:$true] %s139
      %142 = dma.vmem_to_hbm [thread:$0]  %s140, 256, %s2, [#allocation7]
    $region17: #{tpu_custom_call.1} parent=1 // pred_fallthru
      _
    // Predicated region
    $region18: #{tpu_custom_call.1} parent=1 // pred_check
      _
    $region19: #{tpu_custom_call.1} parent=1 // pred_check_branch
      %144 = sbr.rel (0) target = $region21
    $region20: #{tpu_custom_call.1} parent=1 // pred_region
      %s146 = ssub.s32 256, 256
      %147 = vsyncadd [#allocation7], %s146
      %s149 = sshll.u32 [#allocation8], 4
      %s150 = int_to_ptr.vmem [resolvable:$true] %s149
      %152 = dma.vmem_to_hbm [thread:$0]  %s150, 256, %s3, [#allocation7]
    $region21: #{tpu_custom_call.1} parent=1 // pred_fallthru
      _
    // Predicated region
    $region22: #{tpu_custom_call.1} parent=1 // pred_check
      _
    $region23: #{tpu_custom_call.1} parent=1 // pred_check_branch
      %154 = sbr.rel (0) target = $region25
    $region24: #{tpu_custom_call.1} parent=1 // pred_region
      %155 = dma.done [#allocation4], 256
    $region25: #{tpu_custom_call.1} parent=1 // pred_fallthru
      _
    // Predicated region
    $region26: #{tpu_custom_call.1} parent=1 // pred_check
      _
    $region27: #{tpu_custom_call.1} parent=1 // pred_check_branch
      %157 = sbr.rel (0) target = $region29
    $region28: #{tpu_custom_call.1} parent=1 // pred_region
      %158 = dma.done [#allocation7], 256
    $region29: #{tpu_custom_call.1} parent=1 // pred_fallthru
      _
    // Predicated region
    $region30: #{tpu_custom_call.1} parent=1 // pred_check
      _
    $region31: #{tpu_custom_call.1} parent=1 // pred_check_branch
      %160 = sbr.rel (0) target = $region33
    $region32: #{tpu_custom_call.1} parent=1 // pred_region
      %161 = dma.done [#allocation7], 256
    $region33: #{tpu_custom_call.1} parent=1 // pred_fallthru
      _
    %162 = vsyncpa [#allocation3], 1
    %163 = vsyncpa [#allocation4], 1
    %164 = vsyncpa [#allocation7], 1

</llo_original>
